<compile_context>
chip_gen: v6e
topology: v6e:2x2x1
jax: 0.10.0
libtpu: 0.0.40
codegen_flags: <defaults>
</compile_context>

<pallas_src>
import functools

import jax
import jax.numpy as jnp
from jax.experimental import pallas as pl
from jax.experimental.pallas import tpu as pltpu

_IMAGENET_MEAN = (0.485, 0.456, 0.406)
_IMAGENET_STD = (0.229, 0.224, 0.225)


def _round_up(x, m):
    return ((x + m - 1) // m) * m


def _vmem_limit_bytes():
    """Generation-aware scoped-VMEM limit (~3/4 of physical per-core VMEM)."""
    phys = None
    try:
        info = pltpu.get_tpu_info()
        phys = int(getattr(info, "vmem_capacity_bytes", 0)) or None
    except Exception:
        phys = None
    if not phys:
        phys = 64 * 1024 * 1024  # most conservative assumption (v7x: 64 MiB / TC)
    phys = min(phys, 128 * 1024 * 1024)
    return max(32 * 1024 * 1024, (phys * 3) // 4)   # v5e/v6e -> 96 MiB, v7x -> 48 MiB


def _choose_block(rows, hw, itemsize, budget_bytes):
    """Pick a (sublane, lane) block whose footprint never exceeds budget_bytes.

    Sublane tile: multiple of the dtype's vreg packing (8 f32 / 16 bf16 / 32 int8),
    or the full dim when rows is smaller.  Lane tile: multiple of 128 (may exceed hw;
    Pallas masks the ragged tail), or the full dim when hw <= 128.
    """
    min_rows = 8 * max(1, 4 // itemsize)
    r_probe = rows if rows < min_rows else min_rows

    if hw <= 128:
        hw_tile = hw                                   # full dim (allowed)
    else:
        hw_budget = max(128, (budget_bytes // max(1, r_probe * itemsize)) // 128 * 128)
        hw_tile = min(_round_up(hw, 128), hw_budget)   # multiple of 128, ragged tail OK

    if rows < min_rows:
        r_tile = rows                                  # full dim (allowed)
    else:
        r_budget = max(min_rows,
                       (budget_bytes // max(1, hw_tile * itemsize)) // min_rows * min_rows)
        r_tile = min(_round_up(rows, min_rows), r_budget)
    return r_tile, hw_tile, min_rows


def _ensure_two_blocks(r_tile, hw_tile, rows, hw, min_rows, itemsize):
    """If the whole (large) problem landed in one block, split it so both v7x
    TensorCores get a grid iteration.  Tiny problems are left alone."""
    if pl.cdiv(rows, r_tile) * pl.cdiv(hw, hw_tile) >= 2:
        return r_tile, hw_tile
    if r_tile * hw_tile * itemsize <= (1 << 20):
        return r_tile, hw_tile
    if rows >= 2 * min_rows and r_tile >= 2 * min_rows:
        r_tile = _round_up(pl.cdiv(r_tile, 2), min_rows)     # keep lane-dense stores
    elif hw > 256 and hw_tile >= 256:
        hw_tile = _round_up(pl.cdiv(hw_tile, 2), 128)
    return r_tile, hw_tile


def _normalize_kernel(x_ref, o_ref, *, mean, std, c, block_rows):
    """o = (x - mean[ch]) * (1/std[ch]), ch = global_row % c, computed in f32.

    The per-row channel constants are synthesized on the VPU (sublane iota + a
    short where chain) instead of being streamed from HBM — free under the HBM
    bound and removes two pipelined input buffers.
    """
    i = pl.program_id(0)
    row = jax.lax.broadcasted_iota(jnp.int32, (block_rows, 1), 0) + i * block_rows
    ch = row % c

    neg_mean = jnp.full((block_rows, 1), float(mean[c - 1]), dtype=jnp.float32)
    inv_std = jnp.full((block_rows, 1), float(1.0 / std[c - 1]), dtype=jnp.float32)
    for k in range(c - 1):
        neg_mean = jnp.where(ch == k, float(mean[k]), neg_mean)
        inv_std = jnp.where(ch == k, float(1.0 / std[k]), inv_std)

    xf = x_ref[...].astype(jnp.float32)
    o_ref[...] = ((xf - neg_mean) * inv_std).astype(o_ref.dtype)


@functools.partial(jax.jit, static_argnames=("mean", "std", "in_place"))
def normalize_nchw(x, mean=_IMAGENET_MEAN, std=_IMAGENET_STD, in_place=False):
    """Pallas implementation of `(x - mean.view(C,1,1)) / std.view(C,1,1)` for NCHW x."""
    N, C, H, W = x.shape
    assert len(mean) == C and len(std) == C
    rows, hw = N * C, H * W
    itemsize = jnp.dtype(x.dtype).itemsize

    vmem_limit = _vmem_limit_bytes()
    # in + out, double-buffered = 4 block-sized buffers; /6 leaves headroom.
    budget = min(16 * 1024 * 1024, vmem_limit // 6)

    r_tile, hw_tile, min_rows = _choose_block(rows, hw, itemsize, budget)
    r_tile, hw_tile = _ensure_two_blocks(r_tile, hw_tile, rows, hw, min_rows, itemsize)

    # Contiguous NCHW -> lane-dense (N*C, H*W) slab: metadata-only reshape,
    # last dim large and (mostly) 128-aligned -> unmasked vst + big DMAs.
    x2 = x.reshape(rows, hw)
    grid = (pl.cdiv(rows, r_tile), pl.cdiv(hw, hw_tile))

    kernel = functools.partial(
        _normalize_kernel,
        mean=tuple(float(m) for m in mean),
        std=tuple(float(s) for s in std),
        c=C,
        block_rows=r_tile,
    )

    out2 = pl.pallas_call(
        kernel,
        out_shape=jax.ShapeDtypeStruct((rows, hw), x.dtype),
        grid=grid,
        in_specs=[pl.BlockSpec((r_tile, hw_tile), lambda i, j: (i, j))],
        out_specs=pl.BlockSpec((r_tile, hw_tile), lambda i, j: (i, j)),
        input_output_aliases=({0: 0} if in_place else {}),
        compiler_params=pltpu.CompilerParams(
            dimension_semantics=("parallel", "parallel"),
            vmem_limit_bytes=vmem_limit,
        ),
        cost_estimate=pl.CostEstimate(
            flops=2 * rows * hw,
            transcendentals=0,
            bytes_accessed=2 * rows * hw * itemsize,
        ),
    )(x2)

    return out2.reshape(N, C, H, W)


def efficientnet_model_forward(x, mean=_IMAGENET_MEAN, std=_IMAGENET_STD):
    """Forward pass of `efficientnet_model`: per-channel normalize, then the backbone."""
    x = normalize_nchw(x, mean=mean, std=std)
    # TODO(synk): the wrapped pretrained EfficientNet backbone (`self.model`) is an
    # external network whose architecture/weights are not part of this module; only
    # the module's own preprocessing is implemented as a Pallas kernel.
    return x


def _reference(x, mean=_IMAGENET_MEAN, std=_IMAGENET_STD):
    """Pure-JAX reference matching the PyTorch forward: (x - mean) / std, NCHW."""
    m = jnp.asarray(mean, dtype=jnp.float32).reshape(1, -1, 1, 1)
    s = jnp.asarray(std, dtype=jnp.float32).reshape(1, -1, 1, 1)
    return ((x.astype(jnp.float32) - m) / s).astype(x.dtype)


if __name__ == "__main__":
    key = jax.random.PRNGKey(0)
    # NCHW image batch in [0, 1]; the module's mean/std imply 3 channels.
    x = jax.random.uniform(key, (2, 3, 16, 16), dtype=jnp.float32)
    y = jax.block_until_ready(efficientnet_model_forward(x))
    assert y.shape == x.shape and y.dtype == x.dtype
    assert jnp.allclose(y, _reference(x), atol=1e-5, rtol=1e-5), "mismatch vs reference"

    # Non-128-aligned spatial size (H*W = 400) exercises the budget-safe ragged path.
    x_ragged = jax.random.uniform(jax.random.PRNGKey(1), (2, 3, 20, 20), dtype=jnp.float32)
    y_ragged = jax.block_until_ready(normalize_nchw(x_ragged))
    assert jnp.allclose(y_ragged, _reference(x_ragged), atol=1e-5, rtol=1e-5), "ragged mismatch"

    print("KERNEL_OK")
</pallas_src>

<mosaic_0001>
module attributes {stable_mosaic.version = 11 : i64} {
  func.func @_normalize_kernel(%arg0: i32, %arg1: i32, %arg2: memref<6x256xf32, #tpu.memory_space<vmem>>, %arg3: memref<6x256xf32, #tpu.memory_space<vmem>>) attributes {dimension_semantics = [#tpu.dimension_semantics<parallel>, #tpu.dimension_semantics<parallel>], iteration_bounds = array<i64: 1, 1>, scalar_prefetch = 0 : i64, scratch_operands = 0 : i64, tpu.core_type = #tpu.core_type<tc>, window_params = [{transform_indices = @transform_0, window_bounds = array<i64: 6, 256>}, {transform_indices = @transform_1, window_bounds = array<i64: 6, 256>}]} {
    %0 = tpu.iota {dimensions = array<i32: 0>} : vector<6x1xi32>
    %c6_i32 = arith.constant 6 : i32
    %1 = arith.muli %arg0, %c6_i32 : i32
    %2 = vector.broadcast %1 : i32 to vector<6x1xi32>
    %3 = arith.addi %0, %2 : vector<6x1xi32>
    %c3_i32 = arith.constant 3 : i32
    %c0_i32 = arith.constant 0 : i32
    %4 = arith.cmpi eq, %c3_i32, %c0_i32 : i32
    %c1_i32 = arith.constant 1 : i32
    %5 = arith.select %4, %c1_i32, %c3_i32 : i32
    %6 = vector.broadcast %5 : i32 to vector<6x1xi32>
    %7 = arith.remsi %3, %6 : vector<6x1xi32>
    %c0_i32_0 = arith.constant 0 : i32
    %8 = vector.broadcast %c0_i32_0 : i32 to vector<6x1xi32>
    %9 = arith.cmpi ne, %7, %8 : vector<6x1xi32>
    %c0_i32_1 = arith.constant 0 : i32
    %10 = vector.broadcast %c0_i32_1 : i32 to vector<6x1xi32>
    %11 = arith.cmpi slt, %7, %10 : vector<6x1xi32>
    %c0_i32_2 = arith.constant 0 : i32
    %12 = arith.cmpi slt, %5, %c0_i32_2 : i32
    %13 = vector.broadcast %12 : i1 to vector<6x1xi1>
    %14 = vector.broadcast %13 : vector<6x1xi1> to vector<6x1xi1>
    %15 = arith.xori %11, %14 : vector<6x1xi1>
    %16 = arith.andi %15, %9 : vector<6x1xi1>
    %17 = vector.broadcast %5 : i32 to vector<6x1xi32>
    %18 = arith.addi %7, %17 : vector<6x1xi32>
    %19 = arith.select %16, %18, %7 : vector<6x1xi1>, vector<6x1xi32>
    %cst = arith.constant 4.060000e-01 : f32
    %20 = vector.broadcast %cst : f32 to vector<6x1xf32>
    %cst_3 = arith.constant 4.44444466 : f32
    %21 = vector.broadcast %cst_3 : f32 to vector<6x1xf32>
    %c0_i32_4 = arith.constant 0 : i32
    %22 = vector.broadcast %c0_i32_4 : i32 to vector<6x1xi32>
    %23 = arith.cmpi eq, %19, %22 : vector<6x1xi32>
    %cst_5 = arith.constant 4.850000e-01 : f32
    %24 = vector.broadcast %cst_5 : f32 to vector<6x1xf32>
    %25 = arith.select %23, %24, %20 : vector<6x1xi1>, vector<6x1xf32>
    %c0_i32_6 = arith.constant 0 : i32
    %26 = vector.broadcast %c0_i32_6 : i32 to vector<6x1xi32>
    %27 = arith.cmpi eq, %19, %26 : vector<6x1xi32>
    %cst_7 = arith.constant 4.36681223 : f32
    %28 = vector.broadcast %cst_7 : f32 to vector<6x1xf32>
    %29 = arith.select %27, %28, %21 : vector<6x1xi1>, vector<6x1xf32>
    %c1_i32_8 = arith.constant 1 : i32
    %30 = vector.broadcast %c1_i32_8 : i32 to vector<6x1xi32>
    %31 = arith.cmpi eq, %19, %30 : vector<6x1xi32>
    %cst_9 = arith.constant 4.560000e-01 : f32
    %32 = vector.broadcast %cst_9 : f32 to vector<6x1xf32>
    %33 = arith.select %31, %32, %25 : vector<6x1xi1>, vector<6x1xf32>
    %c1_i32_10 = arith.constant 1 : i32
    %34 = vector.broadcast %c1_i32_10 : i32 to vector<6x1xi32>
    %35 = arith.cmpi eq, %19, %34 : vector<6x1xi32>
    %cst_11 = arith.constant 4.46428585 : f32
    %36 = vector.broadcast %cst_11 : f32 to vector<6x1xf32>
    %37 = arith.select %35, %36, %29 : vector<6x1xi1>, vector<6x1xf32>
    %c0 = arith.constant 0 : index
    %c0_12 = arith.constant 0 : index
    %38 = vector.load %arg2[%c0, %c0_12] : memref<6x256xf32, #tpu.memory_space<vmem>>, vector<6x256xf32>
    %39 = vector.broadcast %33 : vector<6x1xf32> to vector<6x256xf32>
    %40 = arith.subf %38, %39 : vector<6x256xf32>
    %41 = vector.broadcast %37 : vector<6x1xf32> to vector<6x256xf32>
    %42 = arith.mulf %40, %41 : vector<6x256xf32>
    %c0_13 = arith.constant 0 : index
    %c0_14 = arith.constant 0 : index
    %43 = vector.load %arg3[%c0_13, %c0_14] : memref<6x256xf32, #tpu.memory_space<vmem>>, vector<6x256xf32>
    tpu.vector_store %arg3[%c0_13, %c0_14], %42 {strides = array<i32>} : memref<6x256xf32, #tpu.memory_space<vmem>>, vector<6x256xf32>,
    return
  }
  func.func @transform_0(%arg0: i32, %arg1: i32) -> (i32, i32) {
    %c0_i32 = arith.constant 0 : i32
    return %arg0, %arg1 : i32, i32
  }
  func.func @transform_1(%arg0: i32, %arg1: i32) -> (i32, i32) {
    %c0_i32 = arith.constant 0 : i32
    return %arg0, %arg1 : i32, i32
  }
}

</mosaic_0001>

<llo_original>
// kernel: normalize_nchw.1
$region0: #{normalize_nchw.1}
  #allocation0 [shape = 'u32[]', space=smem, size = 0x4, offset = 0x4, fixed_abs, tag = 'smem constant byte address 0x4 - core index']
  #allocation1 [shape = 'u32[144,128]{1,0:T(1,128)}', space=vmem, size = 0x12000, scoped, tag = 'internal scratch']
  %s0 = inlined_call_operand.vmem [shape: f32[6,256], index: 0, kind: input, shape index: {}]
  %s1 = inlined_call_operand.vmem [shape: f32[6,256], index: 1, kind: output, shape index: {}]
  %s2 = sld [smem:[#allocation0]]
  $region14: #{normalize_nchw.1} parent=0
    _
  %s4 = ssub.s32 1, %s2
  %s5 = scalar_select 0, %s4, %s2
  // Predicated region
  $region2: #{normalize_nchw.1} parent=0 // pred_check
    _
  $region3: #{normalize_nchw.1} parent=0 // pred_check_branch
    %7 = sbr.rel (0) target = $region5
  $region4: #{normalize_nchw.1} parent=0 // pred_region
    _
  $region5: #{normalize_nchw.1} parent=0 // pred_fallthru
    _
  %v8 = vlaneseq
  %v9 = vshrl.u32 %v8, 7
  %s10 = smul.u32 0, 6
  %v11 = vstv %s10
  %v12 = vadd.s32 %v9, %v11
  %vm13 = vcmp.lt.s32.totalorder %v12, 0
  %v14 = vsub.s32 0, %v12
  %v15 = vsel %vm13, %v14, %v12
  %v16 = vmul.u32.u64.compose %v15, 2863311531
  %v17 = vextract.low.u32 %v16
  %v18 = vextract.high.u32 %v16
  %v19 = vshrl.u32 %v18, 1
  %v20 = vmul.u32 %v19, 3
  %v21 = vsub.s32 %v15, %v20
  %v22 = vsub.s32 0, %v21
  %v23 = vsel %vm13, %v22, %v21
  %vm24 = vcmp.ne.s32.totalorder %v23, 0
  %vm25 = vcmp.lt.s32.totalorder %v23, 0
  %vm26 = vmand %vm25, %vm24
  %v27 = vadd.s32 %v23, 3
  %v28 = vsel %vm26, %v27, %v23
  %vm29 = vcmp.eq.s32.totalorder %v28, 0
  %v30 = vsel %vm29, 0.485, 0.406
  %v31 = vsel %vm29, 4.366812, 4.4444447
  %vm32 = vcmp.eq.s32.totalorder %v28, 1
  %v33 = vsel %vm32, 0.456, %v30
  %v34 = vsel %vm32, 4.464286, %v31
  %v35 = vld [vmem:[%s0] sm:$0x3f]
  %v36 = vld [vmem:[%s0 + $0x8] sm:$0x3f]
  %v37 = vsub.f32 %v35, %v33
  %v38 = vsub.f32 %v36, %v33
  %v39 = vmul.f32 %v37, %v34
  %v40 = vmul.f32 %v38, %v34
  %41 = vst [vmem:[%s1] sm:$0x3f] %v39
  %42 = vst [vmem:[%s1 + $0x8] sm:$0x3f] %v40
  // Predicated region
  $region6: #{normalize_nchw.1} parent=0 // pred_check
    _
  $region7: #{normalize_nchw.1} parent=0 // pred_check_branch
    %44 = sbr.rel (0) target = $region9
  $region8: #{normalize_nchw.1} parent=0 // pred_region
    _
  $region9: #{normalize_nchw.1} parent=0 // pred_fallthru
    _
  // Predicated region
  $region10: #{normalize_nchw.1} parent=0 // pred_check
    _
  $region11: #{normalize_nchw.1} parent=0 // pred_check_branch
    %46 = sbr.rel (0) target = $region13
  $region12: #{normalize_nchw.1} parent=0 // pred_region
    _
  $region13: #{normalize_nchw.1} parent=0 // pred_fallthru
    _

</llo_original>
